<compile_context>
chip_gen: v6e
topology: v6e:2x2x1
jax: 0.10.0
libtpu: 0.0.40
codegen_flags: <defaults>
</compile_context>

<pallas_src>
import jax
import jax.numpy as jnp
from jax.experimental import pallas as pl
from jax.experimental.pallas import tpu as pltpu

_LANE = 128


def _crm_kernel(mask_ref, spec_ref, out_ref):
    """out = spec * mask (complex multiply) on one (1, 2, tD2, tD3) block."""
    m_r = mask_ref[0, 0].astype(jnp.float32)
    m_i = mask_ref[0, 1].astype(jnp.float32)
    s_r = spec_ref[0, 0].astype(jnp.float32)
    s_i = spec_ref[0, 1].astype(jnp.float32)
    out_ref[0, 0] = (s_r * m_r - s_i * m_i).astype(out_ref.dtype)
    out_ref[0, 1] = (s_i * m_r + s_r * m_i).astype(out_ref.dtype)


def _sublane_multiple(itemsize):
    # Packed-row granularity per sublane: f32 -> 8, bf16 -> 16, int8/fp8 -> 32.
    return 8 * max(1, 4 // itemsize)


def _is_v7x():
    try:
        return "v7" in jax.devices()[0].device_kind.lower()
    except Exception:
        return False


def _choose_tiles(B, D2, D3, itemsize, *, min_steps=8):
    """Pick (tD2, tD3) for a [B, 2, D2, D3] array (D3 = lane axis)."""
    sub = _sublane_multiple(itemsize)

    # Lane (last) dim: full extent when <= 128, otherwise a multiple of 128.
    # Misaligned boundary blocks are masked by Pallas (no pad/slice copies).
    if D3 <= _LANE:
        tD3 = D3
    else:
        tD3 = min(D3 - D3 % _LANE, 4 * _LANE)
    n3 = pl.cdiv(D3, tD3)

    if D2 <= sub:
        tD2 = D2                                   # full-extent block
    else:
        # ~0.5 MiB per channel per block (~1 MiB per array block): measured
        # Pallas data puts 0.5-2 MiB blocks at the HBM roofline plateau.
        target_elems = (512 * 1024) // itemsize
        tD2 = min(D2, max(sub, ((target_elems // tD3) // sub) * sub))
        # Guarantee ~min_steps grid steps: restores DMA double-buffer overlap
        # and gives the second v7x TensorCore work even at batch 1-2.
        want2 = pl.cdiv(min_steps, max(1, B * n3))
        if want2 > 1:
            tD2 = min(tD2, max(sub, (pl.cdiv(D2, want2) // sub) * sub))
    n2 = pl.cdiv(D2, tD2)
    return tD2, tD3, n2, n3


def _make_in_spec(block, idx, bufs):
    if bufs > 2 and hasattr(pl, "Buffered"):
        try:
            return pl.BlockSpec(block, idx, pipeline_mode=pl.Buffered(bufs))
        except TypeError:        # older Pallas without pipeline_mode kwarg
            pass
    return pl.BlockSpec(block, idx)


def _crm_pallas_4d(mask4, spec4):
    """mask4/spec4: [B, 2, D2, D3] (D3 = lane axis). Returns same shape."""
    B, C, D2, D3 = spec4.shape
    dtype = spec4.dtype
    itemsize = jnp.dtype(dtype).itemsize

    tD2, tD3, n2, n3 = _choose_tiles(B, D2, D3, itemsize)
    grid = (B, n2, n3)
    n_steps = B * n2 * n3

    block = (1, 2, tD2, tD3)
    idx = lambda b, i, j: (b, 0, i, j)

    # Deeper input pipeline only when there are enough steps to benefit.
    in_bufs = 3 if n_steps >= 8 else 2

    # Right-sized scoped VMEM: actual working set + 2x slack (<< 16 MiB for the
    # target block size; safe on v7x's 64 MiB VMEM).
    block_bytes = 2 * tD2 * tD3 * itemsize
    need = block_bytes * (2 * in_bufs + 2)
    vmem_limit = int(min(64 << 20, max(4 << 20, 2 * need)))

    # Only CORE_PARALLEL actually shards the grid across v7x's 2 TensorCores;
    # on single-TC chips (v5e/v6e) keep plain "parallel".
    semantics = ("parallel", "parallel", "parallel")
    if _is_v7x() and hasattr(pltpu, "CORE_PARALLEL"):
        steps = (B, n2, n3)
        ax = max(range(3), key=lambda a: steps[a])
        if steps[ax] >= 2:
            sem = [pltpu.PARALLEL] * 3
            sem[ax] = pltpu.CORE_PARALLEL
            semantics = tuple(sem)

    return pl.pallas_call(
        _crm_kernel,
        out_shape=jax.ShapeDtypeStruct((B, 2, D2, D3), dtype),
        grid=grid,
        in_specs=[_make_in_spec(block, idx, in_bufs),
                  _make_in_spec(block, idx, in_bufs)],
        out_specs=pl.BlockSpec(block, idx),
        compiler_params=pltpu.CompilerParams(
            dimension_semantics=semantics,
            vmem_limit_bytes=vmem_limit,
        ),
        cost_estimate=pl.CostEstimate(
            flops=6 * B * D2 * D3,
            transcendentals=0,
            bytes_accessed=3 * B * 2 * D2 * D3 * itemsize,
        ),
    )(mask4, spec4)


def _crm_reference(mask, spec):
    s_real = spec[:, 0] * mask[:, 0] - spec[:, 1] * mask[:, 1]
    s_imag = spec[:, 1] * mask[:, 0] + spec[:, 0] * mask[:, 1]
    return jnp.stack([s_real, s_imag], axis=1)


def apply_complex_mask(mask, spec, *, force_pallas=False):
    """Pallas equivalent of Mask.forward(mask, spec).

    mask, spec: [B, 2, F, T] arrays of the same dtype. Returns [B, 2, F, T].
    """
    assert mask.shape == spec.shape, "mask/spec shape mismatch"
    assert mask.dtype == spec.dtype, "mask/spec dtype mismatch"
    B, C, F, T = spec.shape
    assert C == 2
    itemsize = jnp.dtype(spec.dtype).itemsize

    # Tiny inputs: launch/DMA-setup overhead dominates -> let XLA fuse it.
    # TODO(synk): for peak perf, fuse this CRM apply into the kernel producing
    # `mask` (saves a full tensor read; this op is purely HBM-bound).
    if not force_pallas and 3 * spec.size * itemsize < (2 << 20):
        return _crm_reference(mask, spec)

    N = F * T
    if N % _LANE == 0:
        # Free bitcast to a fully lane-dense [B, 2, R, 128] view (no copies).
        R = N // _LANE
        out = _crm_pallas_4d(mask.reshape(B, 2, R, _LANE),
                             spec.reshape(B, 2, R, _LANE))
        return out.reshape(B, 2, F, T)

    # Misaligned F*T: tile the (F, T) plane directly. Pallas masks boundary
    # blocks, so there is no pad / slice round-trip (no extra HBM traffic).
    return _crm_pallas_4d(mask, spec)


if __name__ == "__main__":
    key = jax.random.PRNGKey(0)
    k = jax.random.split(key, 6)

    # 1) Module-consistent small demo shape [B=2, 2, F=16, T=16]; forced through
    #    the Pallas path (F*T = 256 is 128-aligned -> flat lane-dense view).
    B, F, T = 2, 16, 16
    mask = jax.random.normal(k[0], (B, 2, F, T), dtype=jnp.float32)
    spec = jax.random.normal(k[1], (B, 2, F, T), dtype=jnp.float32)
    out = apply_complex_mask(mask, spec, force_pallas=True)
    jax.block_until_ready(out)
    assert out.shape == (B, 2, F, T)
    assert jnp.allclose(out, _crm_reference(mask, spec), atol=1e-6), "mismatch (16x16)"

    # 2) Misaligned F*T (257*188 % 128 != 0): exercises direct (F, T) tiling with
    #    masked boundary blocks on both tile axes -- no pad/slice copies.
    mask2 = jax.random.normal(k[2], (2, 2, 257, 188), dtype=jnp.float32)
    spec2 = jax.random.normal(k[3], (2, 2, 257, 188), dtype=jnp.float32)
    out2 = apply_complex_mask(mask2, spec2)
    jax.block_until_ready(out2)
    assert jnp.allclose(out2, _crm_reference(mask2, spec2), atol=1e-5), "mismatch (misaligned)"

    # 3) bf16, 128-aligned F*T: flat lane-dense path with dtype-aware (16-row) tiling.
    mask3 = jax.random.normal(k[4], (1, 2, 64, 256), dtype=jnp.bfloat16)
    spec3 = jax.random.normal(k[5], (1, 2, 64, 256), dtype=jnp.bfloat16)
    out3 = apply_complex_mask(mask3, spec3, force_pallas=True)
    jax.block_until_ready(out3)
    ref3 = _crm_reference(mask3.astype(jnp.float32), spec3.astype(jnp.float32))
    assert jnp.allclose(out3.astype(jnp.float32), ref3, atol=2e-2, rtol=2e-2), "mismatch (bf16)"

    print("KERNEL_OK")
</pallas_src>

<mosaic_0001>
module attributes {stable_mosaic.version = 11 : i64} {
  func.func @_crm_kernel(%arg0: i32, %arg1: i32, %arg2: i32, %arg3: memref<1x2x2x128xf32, #tpu.memory_space<vmem>>, %arg4: memref<1x2x2x128xf32, #tpu.memory_space<vmem>>, %arg5: memref<1x2x2x128xf32, #tpu.memory_space<vmem>>) attributes {dimension_semantics = [#tpu.dimension_semantics<parallel>, #tpu.dimension_semantics<parallel>, #tpu.dimension_semantics<parallel>], iteration_bounds = array<i64: 2, 1, 1>, scalar_prefetch = 0 : i64, scratch_operands = 0 : i64, tpu.core_type = #tpu.core_type<tc>, window_params = [{transform_indices = @transform_0, window_bounds = array<i64: 1, 2, 2, 128>}, {transform_indices = @transform_1, window_bounds = array<i64: 1, 2, 2, 128>}, {transform_indices = @transform_2, window_bounds = array<i64: 1, 2, 2, 128>}]} {
    %c0 = arith.constant 0 : index
    %c0_0 = arith.constant 0 : index
    %c0_1 = arith.constant 0 : index
    %c0_2 = arith.constant 0 : index
    %0 = vector.load %arg3[%c0, %c0_0, %c0_1, %c0_2] : memref<1x2x2x128xf32, #tpu.memory_space<vmem>>, vector<1x1x2x128xf32>
    %1 = vector.shape_cast %0 : vector<1x1x2x128xf32> to vector<2x128xf32>
    %c0_3 = arith.constant 0 : index
    %c1 = arith.constant 1 : index
    %c0_4 = arith.constant 0 : index
    %c0_5 = arith.constant 0 : index
    %2 = vector.load %arg3[%c0_3, %c1, %c0_4, %c0_5] : memref<1x2x2x128xf32, #tpu.memory_space<vmem>>, vector<1x1x2x128xf32>
    %3 = vector.shape_cast %2 : vector<1x1x2x128xf32> to vector<2x128xf32>
    %c0_6 = arith.constant 0 : index
    %c0_7 = arith.constant 0 : index
    %c0_8 = arith.constant 0 : index
    %c0_9 = arith.constant 0 : index
    %4 = vector.load %arg4[%c0_6, %c0_7, %c0_8, %c0_9] : memref<1x2x2x128xf32, #tpu.memory_space<vmem>>, vector<1x1x2x128xf32>
    %5 = vector.shape_cast %4 : vector<1x1x2x128xf32> to vector<2x128xf32>
    %c0_10 = arith.constant 0 : index
    %c1_11 = arith.constant 1 : index
    %c0_12 = arith.constant 0 : index
    %c0_13 = arith.constant 0 : index
    %6 = vector.load %arg4[%c0_10, %c1_11, %c0_12, %c0_13] : memref<1x2x2x128xf32, #tpu.memory_space<vmem>>, vector<1x1x2x128xf32>
    %7 = vector.shape_cast %6 : vector<1x1x2x128xf32> to vector<2x128xf32>
    %8 = arith.mulf %5, %1 : vector<2x128xf32>
    %9 = arith.mulf %7, %3 : vector<2x128xf32>
    %10 = arith.subf %8, %9 : vector<2x128xf32>
    %c0_14 = arith.constant 0 : index
    %c0_15 = arith.constant 0 : index
    %c0_16 = arith.constant 0 : index
    %c0_17 = arith.constant 0 : index
    %11 = vector.load %arg5[%c0_14, %c0_15, %c0_16, %c0_17] : memref<1x2x2x128xf32, #tpu.memory_space<vmem>>, vector<1x1x2x128xf32>
    %12 = vector.shape_cast %11 : vector<1x1x2x128xf32> to vector<2x128xf32>
    %13 = vector.shape_cast %10 : vector<2x128xf32> to vector<1x1x2x128xf32>
    tpu.vector_store %arg5[%c0_14, %c0_15, %c0_16, %c0_17], %13 {strides = array<i32>} : memref<1x2x2x128xf32, #tpu.memory_space<vmem>>, vector<1x1x2x128xf32>,
    %14 = arith.mulf %7, %1 : vector<2x128xf32>
    %15 = arith.mulf %5, %3 : vector<2x128xf32>
    %16 = arith.addf %14, %15 : vector<2x128xf32>
    %c0_18 = arith.constant 0 : index
    %c1_19 = arith.constant 1 : index
    %c0_20 = arith.constant 0 : index
    %c0_21 = arith.constant 0 : index
    %17 = vector.load %arg5[%c0_18, %c1_19, %c0_20, %c0_21] : memref<1x2x2x128xf32, #tpu.memory_space<vmem>>, vector<1x1x2x128xf32>
    %18 = vector.shape_cast %17 : vector<1x1x2x128xf32> to vector<2x128xf32>
    %19 = vector.shape_cast %16 : vector<2x128xf32> to vector<1x1x2x128xf32>
    tpu.vector_store %arg5[%c0_18, %c1_19, %c0_20, %c0_21], %19 {strides = array<i32>} : memref<1x2x2x128xf32, #tpu.memory_space<vmem>>, vector<1x1x2x128xf32>,
    return
  }
  func.func @transform_0(%arg0: i32, %arg1: i32, %arg2: i32) -> (i32, i32, i32, i32) {
    %c0_i32 = arith.constant 0 : i32
    %c0_i32_0 = arith.constant 0 : i32
    return %arg0, %c0_i32, %arg1, %arg2 : i32, i32, i32, i32
  }
  func.func @transform_1(%arg0: i32, %arg1: i32, %arg2: i32) -> (i32, i32, i32, i32) {
    %c0_i32 = arith.constant 0 : i32
    %c0_i32_0 = arith.constant 0 : i32
    return %arg0, %c0_i32, %arg1, %arg2 : i32, i32, i32, i32
  }
  func.func @transform_2(%arg0: i32, %arg1: i32, %arg2: i32) -> (i32, i32, i32, i32) {
    %c0_i32 = arith.constant 0 : i32
    %c0_i32_0 = arith.constant 0 : i32
    return %arg0, %c0_i32, %arg1, %arg2 : i32, i32, i32, i32
  }
}

</mosaic_0001>

<llo_original>
// kernel: tpu_custom_call.1
$region0: #{tpu_custom_call.1}
  #allocation0 [shape = 'u32[]', space=smem, size = 0x4, offset = 0x4, fixed_abs, tag = 'smem constant byte address 0x4 - core index']
  #allocation1 [shape = 'u32[144,128]{1,0:T(1,128)}', space=vmem, size = 0x12000, scoped, tag = 'internal scratch']
  %s0 = inlined_call_operand.hbm [shape: f32[2,2,2,128], index: 0, kind: input, shape index: {}]
  %s1 = inlined_call_operand.hbm [shape: f32[2,2,2,128], index: 1, kind: input, shape index: {}]
  %s2 = inlined_call_operand.hbm [shape: f32[2,2,2,128], index: 2, kind: output, shape index: {}]
  %s3 = sld [smem:[#allocation0]]
  $region49: #{tpu_custom_call.1} parent=0
    _
  %s5 = ssub.s32 1, %s3
  %s6 = scalar_select 0, %s5, %s3
  $region1: #{tpu_custom_call.1} parent=0
    #allocation2 [shape = 'u8[4096]{0}', space=vmem, size = 0x1000, scoped, tag = 'input window, operand 0']
    #allocation3 [shape = 's32[2]{0}', space=sflag, size = 0x8, scoped, tag = 'scoped memory for tpu_custom_call.1']
    #allocation4 [shape = 's32[2]{0}', space=sflag, size = 0x8, scoped, tag = 'scoped memory for tpu_custom_call.1']
    #allocation5 [shape = 'u8[4096]{0}', space=vmem, size = 0x1000, scoped, tag = 'input window, operand 1']
    #allocation6 [shape = 's32[2]{0}', space=sflag, size = 0x8, scoped, tag = 'scoped memory for tpu_custom_call.1']
    #allocation7 [shape = 'u8[4096]{0}', space=vmem, size = 0x1000, scoped, tag = 'output window, operand 0']
    %7 = vsyncpa [#allocation3], 0
    %s8 = scalar_lea.sflag [#allocation3], 1
    %9 = vsyncpa %s8, 0
    %10 = vsyncpa [#allocation6], 0
    %s11 = scalar_lea.sflag [#allocation6], 1
    %12 = vsyncpa %s11, 0
    %13 = vsyncpa [#allocation4], 0
    %s14 = scalar_lea.sflag [#allocation4], 1
    %15 = vsyncpa %s14, 0
    loop: start=0, step=1, limit=4
    $region2: #{tpu_custom_call.1} parent=1 // loop_pre_header
      _
    $region3: #{tpu_custom_call.1} parent=1 // loop_header
      %s17 = sphi 0, %s21
      %p18 = scmp.ge.s32.totalorder %s17, 4
      %s24 = sphi 0, %s43
      %s25 = sphi 0, %s39
      %s26 = sphi 0, %s35
      %s27 = sphi 0, %s24
      %s28 = sphi 0, %s25
      %s29 = sphi 0, %s26
      %s30 = sphi 0, %s27
      %s31 = sphi 0, %s28
      %s32 = sphi 0, %s29
      %s50 = sphi 0, %s52
      %s53 = sphi 0, %s50
      %s54 = sphi 0, %s53
      %s70 = sphi 0, %s54
      %s80 = sphi 0, %s82
      %s83 = sphi 0, %s80
      %s84 = sphi 0, %s83
      %s100 = sphi 0, %s84
      %s110 = sphi 0, %s112
      %s113 = sphi 0, %s110
      %s114 = sphi 0, %s113
      %s130 = sphi 0, %s114
    $region4: #{tpu_custom_call.1} parent=1 // loop_header_branch
      %20 = sbr.rel (%p18) target = $region8
    $region5: #{tpu_custom_call.1} parent=1 // loop_body
      %s22 = ssub.s32 %s17, 1
      %s23 = ssub.s32 %s17, 2
      %s33 = sadd.s32 1, %s26
      %p34 = scmp.ge.s32.totalorder %s33, 1
      %s35 = scalar_select %p34, 0, %s33
      %s36 = sadd.s32 1, %s25
      %s37 = scalar_select %p34, %s36, %s25
      %p38 = scmp.ge.s32.totalorder %s37, 1
      %s39 = scalar_select %p38, 0, %s37
      %s40 = sadd.s32 1, %s24
      %s41 = scalar_select %p38, %s40, %s24
      %p42 = scmp.ge.s32.totalorder %s41, 2
      %s43 = scalar_select %p42, 0, %s41
      %s44 = ssub.s32 %s24, %s43
      %s45 = ssub.s32 %s25, %s39
      %s46 = sor.u32 %s44, %s45
      %s47 = ssub.s32 %s26, %s35
      %s48 = sor.u32 %s46, %s47
      %p49 = scmp.eq.s32.totalorder %s48, 0
      %s51 = sadd.s32 %s50, 1
      %s52 = scalar_select %p49, %s50, %s51
      %p55 = pneg %p49
      %p56 = scmp.eq.s32.totalorder %s17, 1
      %p57 = por %p55, %p56
      %p58 = scmp.ne.s32.totalorder %s50, %s53
      %p59 = scmp.eq.s32.totalorder %s17, 0
      %p60 = por %p58, %p59
      %p61 = scmp.ne.s32.totalorder %s50, %s53
      %p62 = scmp.eq.s32.totalorder %s22, 1
      %p63 = por %p61, %p62
      %p64 = scmp.ne.s32.totalorder %s53, %s54
      %p65 = scmp.eq.s32.totalorder %s22, 0
      %p66 = por %p64, %p65
      %p67 = scmp.ne.s32.totalorder %s53, %s54
      %p68 = scmp.eq.s32.totalorder %s23, 1
      %p69 = por %p67, %p68
      %p71 = scmp.ne.s32.totalorder %s54, %s70
      %p72 = scmp.eq.s32.totalorder %s23, 0
      %p73 = por %p71, %p72
      %s74 = ssub.s32 %s24, %s43
      %s75 = ssub.s32 %s25, %s39
      %s76 = sor.u32 %s74, %s75
      %s77 = ssub.s32 %s26, %s35
      %s78 = sor.u32 %s76, %s77
      %p79 = scmp.eq.s32.totalorder %s78, 0
      %s81 = sadd.s32 %s80, 1
      %s82 = scalar_select %p79, %s80, %s81
      %p85 = pneg %p79
      %p86 = scmp.eq.s32.totalorder %s17, 1
      %p87 = por %p85, %p86
      %p88 = scmp.ne.s32.totalorder %s80, %s83
      %p89 = scmp.eq.s32.totalorder %s17, 0
      %p90 = por %p88, %p89
      %p91 = scmp.ne.s32.totalorder %s80, %s83
      %p92 = scmp.eq.s32.totalorder %s22, 1
      %p93 = por %p91, %p92
      %p94 = scmp.ne.s32.totalorder %s83, %s84
      %p95 = scmp.eq.s32.totalorder %s22, 0
      %p96 = por %p94, %p95
      %p97 = scmp.ne.s32.totalorder %s83, %s84
      %p98 = scmp.eq.s32.totalorder %s23, 1
      %p99 = por %p97, %p98
      %p101 = scmp.ne.s32.totalorder %s84, %s100
      %p102 = scmp.eq.s32.totalorder %s23, 0
      %p103 = por %p101, %p102
      %s104 = ssub.s32 %s24, %s43
      %s105 = ssub.s32 %s25, %s39
      %s106 = sor.u32 %s104, %s105
      %s107 = ssub.s32 %s26, %s35
      %s108 = sor.u32 %s106, %s107
      %p109 = scmp.eq.s32.totalorder %s108, 0
      %s111 = sadd.s32 %s110, 1
      %s112 = scalar_select %p109, %s110, %s111
      %p115 = pneg %p109
      %p116 = scmp.eq.s32.totalorder %s17, 1
      %p117 = por %p115, %p116
      %p118 = scmp.ne.s32.totalorder %s110, %s113
      %p119 = scmp.eq.s32.totalorder %s17, 0
      %p120 = por %p118, %p119
      %p121 = scmp.ne.s32.totalorder %s110, %s113
      %p122 = scmp.eq.s32.totalorder %s22, 1
      %p123 = por %p121, %p122
      %p124 = scmp.ne.s32.totalorder %s113, %s114
      %p125 = scmp.eq.s32.totalorder %s22, 0
      %p126 = por %p124, %p125
      %p127 = scmp.ne.s32.totalorder %s113, %s114
      %p128 = scmp.eq.s32.totalorder %s23, 1
      %p129 = por %p127, %p128
      %p131 = scmp.ne.s32.totalorder %s114, %s130
      %p132 = scmp.eq.s32.totalorder %s23, 0
      %p133 = por %p131, %p132
      %p134 = scmp.le.s32.totalorder 1, %s17
      %p135 = scmp.lt.s32.totalorder %s17, 3
      %p136 = pnand %p134, %p135
      %p137 = pneg %p136
      // Predicated region
      $region9: #{tpu_custom_call.1} parent=5 // pred_check
        _
      $region10: #{tpu_custom_call.1} parent=5 // pred_check_branch
        %139 = sbr.rel (%p136) target = $region12
      $region11: #{tpu_custom_call.1} parent=5 // pred_region
        %s140 = ssub.s32 %s17, 1
      $region12: #{tpu_custom_call.1} parent=5 // pred_fallthru
        _
      %p141 = scmp.lt.s32.totalorder %s17, 2
      // Predicated region
      $region13: #{tpu_custom_call.1} parent=5 // pred_check
        %p142 = pneg %p141
      $region14: #{tpu_custom_call.1} parent=5 // pred_check_branch
        %144 = sbr.rel (%p142) target = $region16
      $region15: #{tpu_custom_call.1} parent=5 // pred_region
        // Predicated region
        $region17: #{tpu_custom_call.1} parent=15 // pred_check
          %p145 = pneg %p60
        $region18: #{tpu_custom_call.1} parent=15 // pred_check_branch
          %147 = sbr.rel (%p145) target = $region20
        $region19: #{tpu_custom_call.1} parent=15 // pred_region
          %s148 = sand.u32 %s50, 1
          %s149 = scalar_lea.sflag [#allocation3], %s148
          %s150 = sand.u32 %s50, 1
          %s151 = smul.addr %s150, 4
          %s152 = scalar_lea.vmem [#allocation2], %s151
          %s154 = ssub.s32 64, 64
          %155 = vsyncadd %s149, %s154
          %s156 = sadd.s32 %s26, %s25
          %s157 = smul.addr %s24, 2
          %s158 = sadd.s32 %s156, %s157
          %s159 = smul.addr %s158, 32
          %s160 = scalar_lea.hbm %s0, %s159
          %s161 = sshll.u32 %s152, 4
          %s162 = int_to_ptr.vmem [resolvable:$true] %s161
          %167 = dma.hbm_to_vmem [thread:$0]  %s160, 64, %s162, %s149, 32, 32, 2
        $region20: #{tpu_custom_call.1} parent=15 // pred_fallthru
          _
        // Predicated region
        $region21: #{tpu_custom_call.1} parent=15 // pred_check
          %p168 = pneg %p90
        $region22: #{tpu_custom_call.1} parent=15 // pred_check_branch
          %170 = sbr.rel (%p168) target = $region24
        $region23: #{tpu_custom_call.1} parent=15 // pred_region
          %s171 = sand.u32 %s80, 1
          %s172 = scalar_lea.sflag [#allocation6], %s171
          %s173 = sand.u32 %s80, 1
          %s174 = smul.addr %s173, 4
          %s175 = scalar_lea.vmem [#allocation5], %s174
          %s177 = ssub.s32 64, 64
          %178 = vsyncadd %s172, %s177
          %s179 = sadd.s32 %s26, %s25
          %s180 = smul.addr %s24, 2
          %s181 = sadd.s32 %s179, %s180
          %s182 = smul.addr %s181, 32
          %s183 = scalar_lea.hbm %s1, %s182
          %s184 = sshll.u32 %s175, 4
          %s185 = int_to_ptr.vmem [resolvable:$true] %s184
          %190 = dma.hbm_to_vmem [thread:$0]  %s183, 64, %s185, %s172, 32, 32, 2
        $region24: #{tpu_custom_call.1} parent=15 // pred_fallthru
          _
      $region16: #{tpu_custom_call.1} parent=5 // pred_fallthru
        _
      %p191 = scmp.le.s32.totalorder 1, %s17
      %p192 = scmp.lt.s32.totalorder %s17, 3
      %p193 = pnand %p191, %p192
      %p194 = pneg %p193
      // Predicated region
      $region25: #{tpu_custom_call.1} parent=5 // pred_check
        _
      $region26: #{tpu_custom_call.1} parent=5 // pred_check_branch
        %196 = sbr.rel (%p193) target = $region28
      $region27: #{tpu_custom_call.1} parent=5 // pred_region
        %s197 = ssub.s32 %s17, 1
        %s198 = sand.u32 %s53, 1
        %s199 = scalar_lea.sflag [#allocation3], %s198
        %s200 = sand.u32 %s53, 1
        %s201 = smul.addr %s200, 4
        %s202 = scalar_lea.vmem [#allocation2], %s201
        // Predicated region
        $region29: #{tpu_custom_call.1} parent=27 // pred_check
          %p203 = pneg %p66
        $region30: #{tpu_custom_call.1} parent=27 // pred_check_branch
          %205 = sbr.rel (%p203) target = $region32
        $region31: #{tpu_custom_call.1} parent=27 // pred_region
          %206 = dma.done %s199, 64
        $region32: #{tpu_custom_call.1} parent=27 // pred_fallthru
          _
        %s207 = sand.u32 %s83, 1
        %s208 = scalar_lea.sflag [#allocation6], %s207
        %s209 = sand.u32 %s83, 1
        %s210 = smul.addr %s209, 4
        %s211 = scalar_lea.vmem [#allocation5], %s210
        // Predicated region
        $region33: #{tpu_custom_call.1} parent=27 // pred_check
          %p212 = pneg %p96
        $region34: #{tpu_custom_call.1} parent=27 // pred_check_branch
          %214 = sbr.rel (%p212) target = $region36
        $region35: #{tpu_custom_call.1} parent=27 // pred_region
          %215 = dma.done %s208, 64
        $region36: #{tpu_custom_call.1} parent=27 // pred_fallthru
          _
        %s216 = sand.u32 %s53, 1
        %s217 = scalar_lea.sflag [#allocation3], %s216
        %s218 = sand.u32 %s53, 1
        %s219 = smul.addr %s218, 4
        %s220 = scalar_lea.vmem [#allocation2], %s219
        %p221 = pneg %p66
        %p222 = pneg %p63
        %s223 = sand.u32 %s83, 1
        %s224 = scalar_lea.sflag [#allocation6], %s223
        %s225 = sand.u32 %s83, 1
        %s226 = smul.addr %s225, 4
        %s227 = scalar_lea.vmem [#allocation5], %s226
        %p228 = pneg %p96
        %p229 = pneg %p93
        %p230 = pneg %p126
        %p231 = pneg %p123
        %s232 = sand.u32 %s113, 1
        %s233 = scalar_lea.sflag [#allocation4], %s232
        %s234 = sand.u32 %s113, 1
        %s235 = smul.addr %s234, 4
        %s236 = scalar_lea.vmem [#allocation7], %s235
        %v237 = vld [vmem:[%s202] sm:$0x3]
        %s238 = scalar_lea.vmem %s202, 2 [#allocation2]
        %v239 = vld [vmem:[%s238] sm:$0x3]
        %v240 = vld [vmem:[%s211] sm:$0x3]
        %s241 = scalar_lea.vmem %s211, 2 [#allocation5]
        %v242 = vld [vmem:[%s241] sm:$0x3]
        %v243 = vmul.f32 %v240, %v237
        %v244 = vmul.f32 %v242, %v239
        %v245 = vsub.f32 %v243, %v244
        %246 = vst [vmem:[%s236] sm:$0x3] %v245
        %v247 = vmul.f32 %v242, %v237
        %v248 = vmul.f32 %v240, %v239
        %v249 = vadd.f32 %v247, %v248
        %s250 = scalar_lea.vmem %s236, 2 [#allocation7]
        %251 = vst [vmem:[%s250] sm:$0x3] %v249
        %s252 = sand.u32 %s113, 1
        %s253 = scalar_lea.sflag [#allocation4], %s252
        %s254 = sand.u32 %s113, 1
        %s255 = smul.addr %s254, 4
        %s256 = scalar_lea.vmem [#allocation7], %s255
        // Predicated region
        $region37: #{tpu_custom_call.1} parent=27 // pred_check
          %p257 = pneg %p123
        $region38: #{tpu_custom_call.1} parent=27 // pred_check_branch
          %259 = sbr.rel (%p257) target = $region40
        $region39: #{tpu_custom_call.1} parent=27 // pred_region
          %s261 = ssub.s32 64, 64
          %262 = vsyncadd %s253, %s261
          %s263 = sadd.s32 %s29, %s28
          %s264 = smul.addr %s27, 2
          %s265 = sadd.s32 %s263, %s264
          %s266 = smul.addr %s265, 32
          %s267 = scalar_lea.hbm %s2, %s266
          %s268 = sshll.u32 %s256, 4
          %s269 = int_to_ptr.vmem [resolvable:$true] %s268
          %274 = dma.vmem_to_hbm [thread:$0]  %s269, 64, %s267, %s253, 32, 32, 2
        $region40: #{tpu_custom_call.1} parent=27 // pred_fallthru
          _
      $region28: #{tpu_custom_call.1} parent=5 // pred_fallthru
        _
      %p275 = scmp.le.s32.totalorder 2, %s17
      // Predicated region
      $region41: #{tpu_custom_call.1} parent=5 // pred_check
        %p276 = pneg %p275
      $region42: #{tpu_custom_call.1} parent=5 // pred_check_branch
        %278 = sbr.rel (%p276) target = $region44
      $region43: #{tpu_custom_call.1} parent=5 // pred_region
        %s279 = ssub.s32 %s17, 2
        // Predicated region
        $region45: #{tpu_custom_call.1} parent=43 // pred_check
          %p280 = pneg %p129
        $region46: #{tpu_custom_call.1} parent=43 // pred_check_branch
          %282 = sbr.rel (%p280) target = $region48
        $region47: #{tpu_custom_call.1} parent=43 // pred_region
          %s283 = sand.u32 %s114, 1
          %s284 = scalar_lea.sflag [#allocation4], %s283
          %s285 = sand.u32 %s114, 1
          %s286 = smul.addr %s285, 4
          %s287 = scalar_lea.vmem [#allocation7], %s286
          %288 = dma.done %s284, 64
        $region48: #{tpu_custom_call.1} parent=43 // pred_fallthru
          _
      $region44: #{tpu_custom_call.1} parent=5 // pred_fallthru
        _
    $region6: #{tpu_custom_call.1} parent=1 // loop_footer
      %s21 = sadd.s32 1, %s17
    $region7: #{tpu_custom_call.1} parent=1 // loop_footer_branch
      %16 = sbr.rel target = $region3
    $region8: #{tpu_custom_call.1} parent=1 // loop_exit
      _
    %289 = vsyncpa [#allocation3], 1
    %s290 = scalar_lea.sflag [#allocation3], 1
    %291 = vsyncpa %s290, 1
    %292 = vsyncpa [#allocation6], 1
    %s293 = scalar_lea.sflag [#allocation6], 1
    %294 = vsyncpa %s293, 1
    %295 = vsyncpa [#allocation4], 1
    %s296 = scalar_lea.sflag [#allocation4], 1
    %297 = vsyncpa %s296, 1

</llo_original>
